<compile_context>
chip_gen: v7x
topology: tpu7x:2x2x1
jax: 0.10.0
libtpu: 0.0.40
codegen_flags: <defaults>
</compile_context>

<pallas_src>
import functools

import jax
import jax.numpy as jnp
from jax.experimental import pallas as pl
from jax.experimental.pallas import tpu as pltpu


def _round_up(a, b):
    return ((a + b - 1) // b) * b


def _drop_path_kernel(rows, x_ref, scale_ref, o_ref):
    """out = x * scale, scale broadcast per sample row.

    x_ref     : VMEM (rows, tile)   input tile (x.dtype)
    scale_ref : VMEM (B_pad, 1)     full per-sample scale vector (x.dtype),
                                    resident across the whole grid
    o_ref     : VMEM (rows, tile)   output tile (x.dtype)
    """
    i = pl.program_id(0)
    start = pl.multiple_of(i * rows, rows)
    s = scale_ref[pl.ds(start, rows), :]            # (rows, 1)
    o_ref[...] = x_ref[...] * s


def drop_path(x, drop_prob, key, training=True):
    """DropPath forward. x: [B, C, H, W] (any trailing shape works)."""
    if drop_prob is None or float(drop_prob) == 0.0 or not training:
        return x

    keep_prob = 1.0 - float(drop_prob)
    B = int(x.shape[0])
    chw = 1
    for d in x.shape[1:]:
        chw *= int(d)

    # ---- Block sizing: ~4 MiB per buffer, dtype-aware, (8,128)-legal. ------
    itemsize = jnp.dtype(x.dtype).itemsize
    MAX_BLOCK_BYTES = 4 << 20
    max_elems = max(128, MAX_BLOCK_BYTES // itemsize)

    if chw >= max_elems:
        # Long rows: sublane-dense row group, balanced lane tiles.
        rows = min(B, 8)                            # multiple of 8, or full B
        lane_budget = max(128, max_elems // rows)
        n_j = pl.cdiv(chw, lane_budget)
        tile = _round_up(pl.cdiv(chw, n_j), 128)
        if tile >= chw:
            tile = chw                              # full row is always legal
    else:
        # Short rows: full row per block, batch several samples per step.
        tile = chw
        rows = min(B, 8 * max(1, max_elems // (8 * chw)))  # mult. of 8, or B

    # v7x has 2 TensorCores: make sure a "parallel" axis has >= 2 grid steps
    # whenever there is enough work to split (no-op on v5e/v6e).
    if pl.cdiv(B, rows) * pl.cdiv(chw, tile) == 1:
        if chw >= 256:
            tile = _round_up(pl.cdiv(chw, 2), 128)
        elif B >= 16:
            rows = max(8, (B // 2) // 8 * 8)
        # else: problem is tiny; a single grid step is fine.

    n_i = pl.cdiv(B, rows)
    n_j = pl.cdiv(chw, tile)
    grid = (n_i, n_j)

    # ---- Per-sample Bernoulli(keep_prob) mask folded with 1/keep_prob, -----
    # computed ONCE outside the kernel (no in-kernel PRNG needed).
    u = jax.random.uniform(key, (B,), dtype=jnp.float32)
    scale = jnp.floor(jnp.float32(keep_prob) + u) * jnp.float32(1.0 / keep_prob)
    scale = scale.astype(x.dtype)                   # native-dtype multiply
    B_pad = n_i * rows                              # pad so in-kernel slices are in-bounds
    if B_pad > B:
        scale = jnp.pad(scale, (0, B_pad - B))
    scale = scale.reshape(B_pad, 1)

    x2 = x.reshape(B, chw)                          # lane-dense 2D view

    out = pl.pallas_call(
        functools.partial(_drop_path_kernel, rows),
        out_shape=jax.ShapeDtypeStruct((B, chw), x.dtype),
        grid=grid,
        in_specs=[
            pl.BlockSpec((rows, tile), lambda i, j: (i, j)),
            # Whole scale vector resident (constant index map -> single DMA).
            pl.BlockSpec((B_pad, 1), lambda i, j: (0, 0)),
        ],
        out_specs=pl.BlockSpec((rows, tile), lambda i, j: (i, j)),
        compiler_params=pltpu.CompilerParams(
            # Every grid step is independent -> v7x's 2 TCs can split them.
            dimension_semantics=("parallel", "parallel"),
            # Explicit headroom (v5e default is 16 MiB); actual use ~16 MiB.
            vmem_limit_bytes=32 * 1024 * 1024,
        ),
    )(x2, scale)

    return out.reshape(x.shape)


if __name__ == "__main__":
    root = jax.random.PRNGKey(0)
    data_key, mask_key = jax.random.split(root)
    x = jax.random.normal(data_key, (2, 4, 16, 16), dtype=jnp.float32)

    drop_prob = 0.3
    out = drop_path(x, drop_prob=drop_prob, key=mask_key, training=True)
    out = jax.block_until_ready(out)
    assert out.shape == x.shape and out.dtype == x.dtype

    # Sanity: each sample is either exactly 0 or (approximately) x / keep_prob.
    keep_prob = 1.0 - drop_prob
    for b in range(x.shape[0]):
        sb = out[b]
        is_zero = bool(jnp.all(sb == 0.0))
        is_scaled = bool(jnp.allclose(sb, x[b] / keep_prob, rtol=1e-5, atol=1e-6))
        assert is_zero or is_scaled, f"sample {b}: not a valid DropPath output"

    # Eval mode and drop_prob == 0 are the identity.
    out_eval = drop_path(x, drop_prob=drop_prob, key=mask_key, training=False)
    assert bool(jnp.all(out_eval == x))
    out_zero = drop_path(x, drop_prob=0.0, key=mask_key, training=True)
    assert bool(jnp.all(out_zero == x))

    print("KERNEL_OK")
</pallas_src>

<mosaic_0001>
module attributes {stable_mosaic.version = 11 : i64} {
  func.func @_drop_path_kernel(%arg0: i32, %arg1: i32, %arg2: memref<2x512xf32, #tpu.memory_space<vmem>>, %arg3: memref<2x1xf32, #tpu.memory_space<vmem>>, %arg4: memref<2x512xf32, #tpu.memory_space<vmem>>) attributes {dimension_semantics = [#tpu.dimension_semantics<parallel>, #tpu.dimension_semantics<parallel>], iteration_bounds = array<i64: 1, 2>, scalar_prefetch = 0 : i64, scratch_operands = 0 : i64, tpu.core_type = #tpu.core_type<tc>, window_params = [{transform_indices = @transform_0, window_bounds = array<i64: 2, 512>}, {pipeline_mode = #tpu.pipeline_mode<synchronous>, transform_indices = @transform_1, window_bounds = array<i64: 2, 1>}, {transform_indices = @transform_2, window_bounds = array<i64: 2, 512>}]} {
    %c2_i32 = arith.constant 2 : i32
    %0 = arith.muli %arg0, %c2_i32 : i32
    %1 = tpu.assume_multiple %0, 2 : i32
    %2 = arith.index_cast %1 : i32 to index
    %c0 = arith.constant 0 : index
    %3 = vector.load %arg3[%2, %c0] : memref<2x1xf32, #tpu.memory_space<vmem>>, vector<2x1xf32>
    %c0_0 = arith.constant 0 : index
    %c0_1 = arith.constant 0 : index
    %4 = vector.load %arg2[%c0_0, %c0_1] : memref<2x512xf32, #tpu.memory_space<vmem>>, vector<2x512xf32>
    %5 = vector.broadcast %3 : vector<2x1xf32> to vector<2x512xf32>
    %6 = arith.mulf %4, %5 : vector<2x512xf32>
    %c0_2 = arith.constant 0 : index
    %c0_3 = arith.constant 0 : index
    %7 = vector.load %arg4[%c0_2, %c0_3] : memref<2x512xf32, #tpu.memory_space<vmem>>, vector<2x512xf32>
    tpu.vector_store %arg4[%c0_2, %c0_3], %6 {strides = array<i32>} : memref<2x512xf32, #tpu.memory_space<vmem>>, vector<2x512xf32>,
    return
  }
  func.func @transform_0(%arg0: i32, %arg1: i32) -> (i32, i32) {
    %c0_i32 = arith.constant 0 : i32
    return %arg0, %arg1 : i32, i32
  }
  func.func @transform_1(%arg0: i32, %arg1: i32) -> (i32, i32) {
    %c0_i32 = arith.constant 0 : i32
    %c0_i32_0 = arith.constant 0 : i32
    %c0_i32_1 = arith.constant 0 : i32
    return %c0_i32, %c0_i32_0 : i32, i32
  }
  func.func @transform_2(%arg0: i32, %arg1: i32) -> (i32, i32) {
    %c0_i32 = arith.constant 0 : i32
    return %arg0, %arg1 : i32, i32
  }
}

</mosaic_0001>

<llo_original>
// kernel: tpu_custom_call.1
$region0: #{tpu_custom_call.1}
  #allocation0 [shape = 'u32[]', space=smem, size = 0x4, offset = 0x4, fixed_abs, tag = 'smem constant byte address 0x4 - core index']
  #allocation1 [shape = 'u32[144,128]{1,0:T(1,128)}', space=vmem, size = 0x12000, scoped, tag = 'internal scratch']
  %s0 = inlined_call_operand.hbm [shape: f32[2,1024], index: 0, kind: input, shape index: {}]
  %s1 = inlined_call_operand.vmem [shape: f32[2,1], index: 1, kind: input, shape index: {}]
  %s2 = inlined_call_operand.hbm [shape: f32[2,1024], index: 2, kind: output, shape index: {}]
  %s3 = sld [smem:[#allocation0]]
  $region45: #{tpu_custom_call.1} parent=0
    _
  %s5 = ssub.s32 1, %s3
  %s6 = scalar_select 0, %s5, %s3
  $region1: #{tpu_custom_call.1} parent=0
    #allocation2 [shape = 'u8[8192]{0}', space=vmem, size = 0x2000, scoped, tag = 'input window, operand 0']
    #allocation3 [shape = 's32[2]{0}', space=sflag, size = 0x8, scoped, tag = 'scoped memory for tpu_custom_call.1']
    #allocation4 [shape = 's32[2]{0}', space=sflag, size = 0x8, scoped, tag = 'scoped memory for tpu_custom_call.1']
    #allocation5 [shape = 'u8[8192]{0}', space=vmem, size = 0x2000, scoped, tag = 'output window, operand 0']
    %7 = vsyncpa [#allocation3], 0
    %s8 = scalar_lea.sflag [#allocation3], 1
    %9 = vsyncpa %s8, 0
    %10 = vsyncpa [#allocation4], 0
    %s11 = scalar_lea.sflag [#allocation4], 1
    %12 = vsyncpa %s11, 0
    loop: start=0, step=1, limit=4
    $region2: #{tpu_custom_call.1} parent=1 // loop_pre_header
      _
    $region3: #{tpu_custom_call.1} parent=1 // loop_header
      %s14 = sphi 0, %s18
      %p15 = scmp.ge.s32.totalorder %s14, 4
      %s21 = sphi 0, %s33
      %s22 = sphi 0, %s29
      %s23 = sphi 0, %s21
      %s24 = sphi 0, %s22
      %s25 = sphi 0, %s23
      %s26 = sphi 0, %s24
      %s38 = sphi 0, %s40
      %s41 = sphi 0, %s38
      %s42 = sphi 0, %s41
      %s58 = sphi 0, %s42
      %s62 = sphi 0, %s62
      %s64 = sphi 0, %s62
      %s65 = sphi 0, %s64
      %s79 = sphi 0, %s65
      %s87 = sphi 0, %s89
      %s90 = sphi 0, %s87
      %s91 = sphi 0, %s90
      %s107 = sphi 0, %s91
    $region4: #{tpu_custom_call.1} parent=1 // loop_header_branch
      %17 = sbr.rel (%p15) target = $region8
    $region5: #{tpu_custom_call.1} parent=1 // loop_body
      %s19 = ssub.s32 %s14, 1
      %s20 = ssub.s32 %s14, 2
      %s27 = sadd.s32 1, %s22
      %p28 = scmp.ge.s32.totalorder %s27, 2
      %s29 = scalar_select %p28, 0, %s27
      %s30 = sadd.s32 1, %s21
      %s31 = scalar_select %p28, %s30, %s21
      %p32 = scmp.ge.s32.totalorder %s31, 1
      %s33 = scalar_select %p32, 0, %s31
      %s34 = ssub.s32 %s21, %s33
      %s35 = ssub.s32 %s22, %s29
      %s36 = sor.u32 %s34, %s35
      %p37 = scmp.eq.s32.totalorder %s36, 0
      %s39 = sadd.s32 %s38, 1
      %s40 = scalar_select %p37, %s38, %s39
      %p43 = pneg %p37
      %p44 = scmp.eq.s32.totalorder %s14, 1
      %p45 = por %p43, %p44
      %p46 = scmp.ne.s32.totalorder %s38, %s41
      %p47 = scmp.eq.s32.totalorder %s14, 0
      %p48 = por %p46, %p47
      %p49 = scmp.ne.s32.totalorder %s38, %s41
      %p50 = scmp.eq.s32.totalorder %s19, 1
      %p51 = por %p49, %p50
      %p52 = scmp.ne.s32.totalorder %s41, %s42
      %p53 = scmp.eq.s32.totalorder %s19, 0
      %p54 = por %p52, %p53
      %p55 = scmp.ne.s32.totalorder %s41, %s42
      %p56 = scmp.eq.s32.totalorder %s20, 1
      %p57 = por %p55, %p56
      %p59 = scmp.ne.s32.totalorder %s42, %s58
      %p60 = scmp.eq.s32.totalorder %s20, 0
      %p61 = por %p59, %p60
      %s63 = sadd.s32 %s62, 1
      %p66 = scmp.eq.s32.totalorder %s14, 1
      %p67 = scmp.ne.s32.totalorder %s62, %s64
      %p68 = scmp.eq.s32.totalorder %s14, 0
      %p69 = por %p67, %p68
      %p70 = scmp.ne.s32.totalorder %s62, %s64
      %p71 = scmp.eq.s32.totalorder %s19, 1
      %p72 = por %p70, %p71
      %p73 = scmp.ne.s32.totalorder %s64, %s65
      %p74 = scmp.eq.s32.totalorder %s19, 0
      %p75 = por %p73, %p74
      %p76 = scmp.ne.s32.totalorder %s64, %s65
      %p77 = scmp.eq.s32.totalorder %s20, 1
      %p78 = por %p76, %p77
      %p80 = scmp.ne.s32.totalorder %s65, %s79
      %p81 = scmp.eq.s32.totalorder %s20, 0
      %p82 = por %p80, %p81
      %s83 = ssub.s32 %s21, %s33
      %s84 = ssub.s32 %s22, %s29
      %s85 = sor.u32 %s83, %s84
      %p86 = scmp.eq.s32.totalorder %s85, 0
      %s88 = sadd.s32 %s87, 1
      %s89 = scalar_select %p86, %s87, %s88
      %p92 = pneg %p86
      %p93 = scmp.eq.s32.totalorder %s14, 1
      %p94 = por %p92, %p93
      %p95 = scmp.ne.s32.totalorder %s87, %s90
      %p96 = scmp.eq.s32.totalorder %s14, 0
      %p97 = por %p95, %p96
      %p98 = scmp.ne.s32.totalorder %s87, %s90
      %p99 = scmp.eq.s32.totalorder %s19, 1
      %p100 = por %p98, %p99
      %p101 = scmp.ne.s32.totalorder %s90, %s91
      %p102 = scmp.eq.s32.totalorder %s19, 0
      %p103 = por %p101, %p102
      %p104 = scmp.ne.s32.totalorder %s90, %s91
      %p105 = scmp.eq.s32.totalorder %s20, 1
      %p106 = por %p104, %p105
      %p108 = scmp.ne.s32.totalorder %s91, %s107
      %p109 = scmp.eq.s32.totalorder %s20, 0
      %p110 = por %p108, %p109
      %p111 = scmp.le.s32.totalorder 1, %s14
      %p112 = scmp.lt.s32.totalorder %s14, 3
      %p113 = pnand %p111, %p112
      %p114 = pneg %p113
      // Predicated region
      $region9: #{tpu_custom_call.1} parent=5 // pred_check
        _
      $region10: #{tpu_custom_call.1} parent=5 // pred_check_branch
        %116 = sbr.rel (%p113) target = $region12
      $region11: #{tpu_custom_call.1} parent=5 // pred_region
        %s117 = ssub.s32 %s14, 1
        // Predicated region
        $region13: #{tpu_custom_call.1} parent=11 // pred_check
          %p118 = pneg %p75
        $region14: #{tpu_custom_call.1} parent=11 // pred_check_branch
          %120 = sbr.rel (%p118) target = $region16
        $region15: #{tpu_custom_call.1} parent=11 // pred_region
          _
        $region16: #{tpu_custom_call.1} parent=11 // pred_fallthru
          _
      $region12: #{tpu_custom_call.1} parent=5 // pred_fallthru
        _
      %p121 = scmp.lt.s32.totalorder %s14, 2
      // Predicated region
      $region17: #{tpu_custom_call.1} parent=5 // pred_check
        %p122 = pneg %p121
      $region18: #{tpu_custom_call.1} parent=5 // pred_check_branch
        %124 = sbr.rel (%p122) target = $region20
      $region19: #{tpu_custom_call.1} parent=5 // pred_region
        // Predicated region
        $region21: #{tpu_custom_call.1} parent=19 // pred_check
          %p125 = pneg %p48
        $region22: #{tpu_custom_call.1} parent=19 // pred_check_branch
          %127 = sbr.rel (%p125) target = $region24
        $region23: #{tpu_custom_call.1} parent=19 // pred_region
          %s128 = sand.u32 %s38, 1
          %s129 = scalar_lea.sflag [#allocation3], %s128
          %s130 = sand.u32 %s38, 1
          %s131 = smul.addr %s130, 8
          %s132 = scalar_lea.vmem [#allocation2], %s131
          %s133 = smul.u32 4, %s22
          %s135 = ssub.s32 128, 128
          %136 = vsyncadd %s129, %s135
          %s137 = smul.addr %s21, 8
          %s138 = sadd.s32 %s133, %s137
          %s139 = smul.addr %s138, 32
          %s140 = scalar_lea.hbm %s0, %s139
          %s142 = sshll.u32 %s132, 4
          %s143 = int_to_ptr.vmem [resolvable:$true] %s142
          %145 = dma.hbm_to_vmem [thread:$0]  %s140, 128, %s143, %s129
        $region24: #{tpu_custom_call.1} parent=19 // pred_fallthru
          _
      $region20: #{tpu_custom_call.1} parent=5 // pred_fallthru
        _
      %p146 = scmp.le.s32.totalorder 1, %s14
      %p147 = scmp.lt.s32.totalorder %s14, 3
      %p148 = pnand %p146, %p147
      %p149 = pneg %p148
      // Predicated region
      $region25: #{tpu_custom_call.1} parent=5 // pred_check
        _
      $region26: #{tpu_custom_call.1} parent=5 // pred_check_branch
        %151 = sbr.rel (%p148) target = $region28
      $region27: #{tpu_custom_call.1} parent=5 // pred_region
        %s152 = ssub.s32 %s14, 1
        %s153 = sand.u32 %s41, 1
        %s154 = scalar_lea.sflag [#allocation3], %s153
        %s155 = sand.u32 %s41, 1
        %s156 = smul.addr %s155, 8
        %s157 = scalar_lea.vmem [#allocation2], %s156
        // Predicated region
        $region29: #{tpu_custom_call.1} parent=27 // pred_check
          %p158 = pneg %p54
        $region30: #{tpu_custom_call.1} parent=27 // pred_check_branch
          %160 = sbr.rel (%p158) target = $region32
        $region31: #{tpu_custom_call.1} parent=27 // pred_region
          %161 = dma.done %s154, 128
        $region32: #{tpu_custom_call.1} parent=27 // pred_fallthru
          _
        %s162 = sand.u32 %s41, 1
        %s163 = scalar_lea.sflag [#allocation3], %s162
        %s164 = sand.u32 %s41, 1
        %s165 = smul.addr %s164, 8
        %s166 = scalar_lea.vmem [#allocation2], %s165
        %p167 = pneg %p54
        %p168 = pneg %p51
        %p169 = pneg %p75
        %p170 = pneg %p72
        %p171 = pneg %p103
        %p172 = pneg %p100
        %s173 = sand.u32 %s90, 1
        %s174 = scalar_lea.sflag [#allocation4], %s173
        %s175 = sand.u32 %s90, 1
        %s176 = smul.addr %s175, 8
        %s177 = scalar_lea.vmem [#allocation5], %s176
        %s178 = smul.u32 4, %s24
        %s179 = smul.u32 4, %s24
        %s180 = smul.u32 %s23, 2
        %s181 = scalar_lea.vmem %s1, %s180
        %v182 = vld [vmem:[%s181] sm:$0x3]
        %v183 = vld [vmem:[%s157] sm:$0xff]
        %185 = vset.pattern.permute.xlu0 0
        %186 = vperm.xlu0 %185, %v182
        %v187 = vpop.permute.xlu0 %186
        %v189 = vunpack.c.l.s4 269488144
        %v190 = vunpack.c.0.s8 %v189
        %v191 = vlaneseq
        %v192 = vshrl.u32 %v191, 7
        %v193 = vsub.s32 %v190, %v192
        %v194 = vrot.slane %v187, %v193
        %v196 = vmul.f32 %v183, %v194
        %197 = vst [vmem:[%s177] sm:$0xff] %v196
        %s198 = sand.u32 %s90, 1
        %s199 = scalar_lea.sflag [#allocation4], %s198
        %s200 = sand.u32 %s90, 1
        %s201 = smul.addr %s200, 8
        %s202 = scalar_lea.vmem [#allocation5], %s201
        // Predicated region
        $region33: #{tpu_custom_call.1} parent=27 // pred_check
          %p203 = pneg %p100
        $region34: #{tpu_custom_call.1} parent=27 // pred_check_branch
          %205 = sbr.rel (%p203) target = $region36
        $region35: #{tpu_custom_call.1} parent=27 // pred_region
          %s206 = smul.u32 4, %s24
          %s208 = ssub.s32 128, 128
          %209 = vsyncadd %s199, %s208
          %s210 = smul.addr %s23, 8
          %s211 = sadd.s32 %s206, %s210
          %s212 = smul.addr %s211, 32
          %s213 = scalar_lea.hbm %s2, %s212
          %s215 = sshll.u32 %s202, 4
          %s216 = int_to_ptr.vmem [resolvable:$true] %s215
          %218 = dma.vmem_to_hbm [thread:$0]  %s216, 128, %s213, %s199
        $region36: #{tpu_custom_call.1} parent=27 // pred_fallthru
          _
      $region28: #{tpu_custom_call.1} parent=5 // pred_fallthru
        _
      %p219 = scmp.le.s32.totalorder 2, %s14
      // Predicated region
      $region37: #{tpu_custom_call.1} parent=5 // pred_check
        %p220 = pneg %p219
      $region38: #{tpu_custom_call.1} parent=5 // pred_check_branch
        %222 = sbr.rel (%p220) target = $region40
      $region39: #{tpu_custom_call.1} parent=5 // pred_region
        %s223 = ssub.s32 %s14, 2
        // Predicated region
        $region41: #{tpu_custom_call.1} parent=39 // pred_check
          %p224 = pneg %p106
        $region42: #{tpu_custom_call.1} parent=39 // pred_check_branch
          %226 = sbr.rel (%p224) target = $region44
        $region43: #{tpu_custom_call.1} parent=39 // pred_region
          %s227 = sand.u32 %s91, 1
          %s228 = scalar_lea.sflag [#allocation4], %s227
          %s229 = sand.u32 %s91, 1
          %s230 = smul.addr %s229, 8
          %s231 = scalar_lea.vmem [#allocation5], %s230
          %232 = dma.done %s228, 128
        $region44: #{tpu_custom_call.1} parent=39 // pred_fallthru
          _
      $region40: #{tpu_custom_call.1} parent=5 // pred_fallthru
        _
    $region6: #{tpu_custom_call.1} parent=1 // loop_footer
      %s18 = sadd.s32 1, %s14
    $region7: #{tpu_custom_call.1} parent=1 // loop_footer_branch
      %13 = sbr.rel target = $region3
    $region8: #{tpu_custom_call.1} parent=1 // loop_exit
      _
    %233 = vsyncpa [#allocation3], 1
    %s234 = scalar_lea.sflag [#allocation3], 1
    %235 = vsyncpa %s234, 1
    %236 = vsyncpa [#allocation4], 1
    %s237 = scalar_lea.sflag [#allocation4], 1
    %238 = vsyncpa %s237, 1

</llo_original>
